<compile_context>
chip_gen: v6e
topology: v6e:2x2x1
jax: 0.10.0
libtpu: 0.0.40
codegen_flags: <defaults>
</compile_context>

<pallas_src>
import jax
import jax.numpy as jnp
import numpy as np
from jax.experimental import pallas as pl
from jax.experimental.pallas import tpu as pltpu


# ---- packed weight-slab row offsets (bf16 slab, 128 lanes wide) -----------------
_ROW_W1 = 0          # (1024, 128) block-diag conv1 weight
_ROW_W2 = 1024       # (128, 32)   conv2 weight
_ROW_W3 = 1152       # (128, 64)   conv3 weight
_ROW_FC1 = 1280      # (64, 64)    fc1 weight (transposed)
_ROW_FC2 = 1344      # (64, out)   fc2 weight (transposed)
_SLAB_ROWS = 1408


def _round_up(a, m):
    return ((a + m - 1) // m) * m


# ------------------------------ fused Pallas kernel -----------------------------

def fused_subnet3_kernel(cols_ref, a2_ref, w_ref, b_ref, o_ref, zcat_ref):
    # cols_ref: (4, Bt, 1024) bf16 — im2col'd, attention-1-scaled input; axis0 = conv2
    #           output position p2, columns = (tap t, c_in, kh1, kw1).
    # a2_ref:   (Bt, 64) f32 — attention_module_2[qp]
    # w_ref:    (1408, 128) bf16 packed weight slab (BN already folded in).
    # b_ref:    (8, 128) f32 packed bias slab (rows: conv1(x4), conv2, conv3, fc1, fc2).
    # o_ref:    (Bt, out_dim) f32
    # zcat_ref: (Bt, 128) f32 VMEM scratch used to gather conv2 taps into lanes.
    Bt = a2_ref.shape[0]
    out_dim = o_ref.shape[1]

    # ---- Conv1 + BN + ReLU: one (4Bt,1024)@(1024,128) dot. The block-diagonal
    # weight emits the 4 conv2 taps as lane groups of the output. --------------
    cols = cols_ref[...].reshape(4 * Bt, 1024)                       # rows (p2, b)
    z1 = jnp.dot(cols, w_ref[_ROW_W1:_ROW_W1 + 1024, :],
                 preferred_element_type=jnp.float32)
    z1 = jnp.maximum(z1 + b_ref[0:1, :], 0.0)                        # (4Bt, 128) f32

    # ---- Conv2 + BN + ReLU: single dot, taps reduced in K. --------------------
    z2 = jnp.dot(z1.astype(jnp.bfloat16), w_ref[_ROW_W2:_ROW_W2 + 128, 0:32],
                 preferred_element_type=jnp.float32)
    z2 = jnp.maximum(z2 + b_ref[1:2, 0:32], 0.0)                     # (4Bt, 32), rows (p2, b)

    # ---- gather the 4 conv2 output positions into lanes: (4Bt,32) -> (Bt,128) --
    # Bt is a multiple of 8, so the row slices are sublane-aligned; the lane-offset
    # stores into scratch are tiny masked vst's.
    for p2 in range(4):
        zcat_ref[:, p2 * 32:(p2 + 1) * 32] = z2[p2 * Bt:(p2 + 1) * Bt, :]

    # ---- Conv3 + BN + ReLU: single (Bt,128)@(128,64) dot. ---------------------
    z3 = jnp.dot(zcat_ref[...].astype(jnp.bfloat16), w_ref[_ROW_W3:_ROW_W3 + 128, 0:64],
                 preferred_element_type=jnp.float32)
    z3 = jnp.maximum(z3 + b_ref[2:3, 0:64], 0.0)                     # (Bt, 64)

    # ---- attention-2 scale + fc1 + ReLU + fc2 (elementwise stays f32) ---------
    h = (z3 * a2_ref[...]).astype(jnp.bfloat16)
    h = jnp.dot(h, w_ref[_ROW_FC1:_ROW_FC1 + 64, 0:64],
                preferred_element_type=jnp.float32)
    h = jnp.maximum(h + b_ref[3:4, 0:64], 0.0)
    out = jnp.dot(h.astype(jnp.bfloat16), w_ref[_ROW_FC2:_ROW_FC2 + 64, 0:out_dim],
                  preferred_element_type=jnp.float32)
    o_ref[...] = out + b_ref[4:5, 0:out_dim]


# --------------------------------- wrapper ---------------------------------------

def subnet3_forward(x, qp_list, fp, batch_tile=128):
    """x: (B, 16, 16, 16) NCHW float32, qp_list: (B,) int32, fp: prepare_params()."""
    B = x.shape[0]
    out_dim = fp['out_dim']

    # Batch tile: multiple of 8 (sublane-aligned), capped at batch_tile.
    Bt = min(_round_up(B, 8), _round_up(batch_tile, 8))
    B_pad = _round_up(B, Bt)
    nb = B_pad // Bt

    a1 = fp['atten1'][qp_list]                                       # (B, 16)
    a2 = fp['atten2'][qp_list]                                       # (B, 64)
    if B_pad != B:
        x = jnp.pad(x, ((0, B_pad - B), (0, 0), (0, 0), (0, 0)))
        a1 = jnp.pad(a1, ((0, B_pad - B), (0, 0)))
        a2 = jnp.pad(a2, ((0, B_pad - B), (0, 0)))

    # attention-1 scale + im2col + bf16 cast in ONE wrapper expression (layout
    # plumbing only; everything compute-heavy is inside the Pallas kernel).
    # Axes: (b, c, p2h, th, kh, p2w, tw, kw) -> (p2h, p2w, b, th, tw, c, kh, kw).
    xs = x * a1[:, :, None, None]
    cols = xs.reshape(B_pad, 16, 2, 2, 4, 2, 2, 4)
    cols = cols.transpose(2, 5, 0, 3, 6, 1, 4, 7)
    cols = cols.reshape(4, B_pad, 1024).astype(jnp.bfloat16)         # (4, B_pad, 1024)

    grid_spec = pltpu.PrefetchScalarGridSpec(
        num_scalar_prefetch=0,
        grid=(nb,),
        in_specs=[
            pl.BlockSpec((4, Bt, 1024), lambda i: (0, i, 0)),        # batch tile of cols
            pl.BlockSpec((Bt, 64), lambda i: (i, 0)),                # batch tile of a2
            pl.BlockSpec((_SLAB_ROWS, 128), lambda i: (0, 0)),       # weight slab (resident)
            pl.BlockSpec((8, 128), lambda i: (0, 0)),                # bias slab (resident)
        ],
        out_specs=pl.BlockSpec((Bt, out_dim), lambda i: (i, 0)),
        scratch_shapes=[pltpu.VMEM((Bt, 128), jnp.float32)],
    )

    out = pl.pallas_call(
        fused_subnet3_kernel,
        out_shape=jax.ShapeDtypeStruct((B_pad, out_dim), jnp.float32),
        grid_spec=grid_spec,
        compiler_params=pltpu.CompilerParams(
            dimension_semantics=("parallel",)),                      # megacore on v7x
    )(cols, a2, fp['w_slab'], fp['b_slab'])
    return out[:B]


# ------------------------- parameters & one-time folding -------------------------

def init_params(key, out_dim=8, atten_input=16):
    ks = jax.random.split(key, 24)

    def n(k, shape, s=0.1):
        return (s * jax.random.normal(k, shape)).astype(jnp.float32)

    def u(k, shape):
        return jax.random.uniform(k, shape, jnp.float32, 0.5, 1.5)

    p = {}
    p['W1'], p['b1'] = n(ks[0], (32, 16, 4, 4)), n(ks[1], (32,))
    p['g1'], p['beta1'] = u(ks[2], (32,)), n(ks[3], (32,))
    p['m1'], p['v1'] = n(ks[4], (32,)), u(ks[5], (32,))
    p['W2'], p['b2'] = n(ks[6], (32, 32, 2, 2)), n(ks[7], (32,))
    p['g2'], p['beta2'] = u(ks[8], (32,)), n(ks[9], (32,))
    p['m2'], p['v2'] = n(ks[10], (32,)), u(ks[11], (32,))
    p['W3'], p['b3'] = n(ks[12], (64, 32, 2, 2)), n(ks[13], (64,))
    p['g3'], p['beta3'] = u(ks[14], (64,)), n(ks[15], (64,))
    p['m3'], p['v3'] = n(ks[16], (64,)), u(ks[17], (64,))
    p['Wfc1'], p['bfc1'] = n(ks[18], (64, 64)), n(ks[19], (64,))
    p['Wfc2'], p['bfc2'] = n(ks[20], (out_dim, 64)), n(ks[21], (out_dim,))
    p['atten1'] = u(ks[22], (atten_input, 16))
    p['atten2'] = u(ks[23], (atten_input, 64))
    return p


def prepare_params(p, eps=1e-5):
    """Fold eval-mode BatchNorm into conv weights/biases, build the block-diagonal
    conv1 weight, and pack everything into one bf16 weight slab + one f32 bias slab.
    Called ONCE, outside the per-call jitted forward."""
    def bn_scale(gamma, var):
        return gamma / jnp.sqrt(var + eps)

    s1, s2, s3 = bn_scale(p['g1'], p['v1']), bn_scale(p['g2'], p['v2']), bn_scale(p['g3'], p['v3'])

    # Conv1: columns (c_in, kh, kw) -> (256, 32), BN folded.
    W1f = p['W1'].reshape(32, 256).T * s1[None, :]
    b1f = (p['b1'] - p['m1']) * s1 + p['beta1']
    # Block-diagonalize over the 4 conv2 taps -> (1024, 128); bias tiled to 128.
    W1blk = jnp.kron(jnp.eye(4, dtype=jnp.float32), W1f)
    b1blk = jnp.tile(b1f, 4)
    # Conv2: rows (tap=(kh,kw), c_in) -> (128, 32)
    W2f = p['W2'].transpose(2, 3, 1, 0).reshape(128, 32) * s2[None, :]
    b2f = (p['b2'] - p['m2']) * s2 + p['beta2']
    # Conv3: rows (tap=(kh,kw), c_in) -> (128, 64)
    W3f = p['W3'].transpose(2, 3, 1, 0).reshape(128, 64) * s3[None, :]
    b3f = (p['b3'] - p['m3']) * s3 + p['beta3']
    # FC head
    Wfc1T = p['Wfc1'].T
    Wfc2T = p['Wfc2'].T
    out_dim = int(Wfc2T.shape[1])

    def pad_lanes(w):
        return jnp.pad(w, ((0, 0), (0, 128 - w.shape[1])))

    w_slab = jnp.concatenate(
        [W1blk, pad_lanes(W2f), pad_lanes(W3f), pad_lanes(Wfc1T), pad_lanes(Wfc2T)],
        axis=0).astype(jnp.bfloat16)                                 # (1408, 128) bf16
    assert w_slab.shape == (_SLAB_ROWS, 128)

    def pad_row(v):
        return jnp.pad(v, (0, 128 - v.shape[0]))

    b_rows = jnp.stack([b1blk, pad_row(b2f), pad_row(b3f),
                        pad_row(p['bfc1']), pad_row(p['bfc2'])], axis=0)
    b_slab = jnp.concatenate([b_rows, jnp.zeros((3, 128), jnp.float32)],
                             axis=0).astype(jnp.float32)             # (8, 128) f32

    return {'w_slab': w_slab, 'b_slab': b_slab,
            'atten1': p['atten1'].astype(jnp.float32),
            'atten2': p['atten2'].astype(jnp.float32),
            'out_dim': out_dim}


# ------------------------- pure-JAX reference (correctness) ----------------------

def ref_forward(x, qp_list, p, eps=1e-5):
    a1 = p['atten1'][qp_list]
    r = x * a1[:, :, None, None]

    def cbr(z, W, b, g, be, m, v, stride):
        z = jax.lax.conv_general_dilated(z, W, stride, 'VALID',
                                         dimension_numbers=('NCHW', 'OIHW', 'NCHW'))
        z = z + b[None, :, None, None]
        z = g[None, :, None, None] * (z - m[None, :, None, None]) / \
            jnp.sqrt(v[None, :, None, None] + eps) + be[None, :, None, None]
        return jnp.maximum(z, 0.0)

    r = cbr(r, p['W1'], p['b1'], p['g1'], p['beta1'], p['m1'], p['v1'], (4, 4))
    r = cbr(r, p['W2'], p['b2'], p['g2'], p['beta2'], p['m2'], p['v2'], (2, 2))
    r = cbr(r, p['W3'], p['b3'], p['g3'], p['beta3'], p['m3'], p['v3'], (2, 2))
    res = r.reshape(x.shape[0], 64)
    res2 = res * p['atten2'][qp_list]
    res2 = jnp.maximum(res2 @ p['Wfc1'].T + p['bfc1'], 0.0)
    return res2 @ p['Wfc2'].T + p['bfc2']


if __name__ == "__main__":
    key = jax.random.PRNGKey(0)
    kx, kq, kp = jax.random.split(key, 3)
    B, out_dim = 2, 8
    x = jax.random.normal(kx, (B, 16, 16, 16), jnp.float32)          # NCHW, C=16, H=W=16
    qp_list = jax.random.randint(kq, (B,), 0, 16, dtype=jnp.int32)
    params = init_params(kp, out_dim=out_dim)
    fparams = prepare_params(params)                                 # BN fold / packing done once

    fwd = jax.jit(lambda xx, qq: subnet3_forward(xx, qq, fparams))
    out = jax.block_until_ready(fwd(x, qp_list))

    ref = ref_forward(x, qp_list, params)
    # bf16 matmul operands (f32 accumulation) -> 2e-2 tolerance.
    np.testing.assert_allclose(np.asarray(out), np.asarray(ref), rtol=2e-2, atol=2e-2)
    print("KERNEL_OK")
</pallas_src>

<mosaic_0001>
module attributes {stable_mosaic.version = 11 : i64} {
  func.func @fused_subnet3_kernel(%arg0: i32, %arg1: memref<4x8x1024xbf16, #tpu.memory_space<vmem>>, %arg2: memref<8x64xf32, #tpu.memory_space<vmem>>, %arg3: memref<1408x128xbf16, #tpu.memory_space<vmem>>, %arg4: memref<8x128xf32, #tpu.memory_space<vmem>>, %arg5: memref<8x8xf32, #tpu.memory_space<vmem>>, %arg6: memref<8x128xf32, #tpu.memory_space<vmem>>) attributes {dimension_semantics = [#tpu.dimension_semantics<parallel>], iteration_bounds = array<i64: 1>, scalar_prefetch = 0 : i64, scratch_operands = 1 : i64, tpu.core_type = #tpu.core_type<tc>, window_params = [{transform_indices = @transform_0, window_bounds = array<i64: 4, 8, 1024>}, {transform_indices = @transform_1, window_bounds = array<i64: 8, 64>}, {pipeline_mode = #tpu.pipeline_mode<synchronous>, transform_indices = @transform_2, window_bounds = array<i64: 1408, 128>}, {pipeline_mode = #tpu.pipeline_mode<synchronous>, transform_indices = @transform_3, window_bounds = array<i64: 8, 128>}, {transform_indices = @transform_4, window_bounds = array<i64: 8, 8>}]} {
    %c0 = arith.constant 0 : index
    %c0_0 = arith.constant 0 : index
    %c0_1 = arith.constant 0 : index
    %0 = vector.load %arg1[%c0, %c0_0, %c0_1] : memref<4x8x1024xbf16, #tpu.memory_space<vmem>>, vector<4x8x1024xbf16>
    %1 = vector.shape_cast %0 : vector<4x8x1024xbf16> to vector<32x1024xbf16>
    %c0_2 = arith.constant 0 : index
    %c0_3 = arith.constant 0 : index
    %2 = vector.load %arg3[%c0_2, %c0_3] : memref<1408x128xbf16, #tpu.memory_space<vmem>>, vector<1024x128xbf16>
    %cst = arith.constant dense<0.000000e+00> : vector<32x128xf32>
    %3 = tpu.matmul %1, %2, %cst {dimension_numbers = #tpu.dot_dimension_numbers<[1], [0], [0], [1], [0, 0, 1, 1], [], []>} : vector<32x1024xbf16>, vector<1024x128xbf16>, vector<32x128xf32> -> vector<32x128xf32>
    %c0_4 = arith.constant 0 : index
    %c0_5 = arith.constant 0 : index
    %4 = vector.load %arg4[%c0_4, %c0_5] : memref<8x128xf32, #tpu.memory_space<vmem>>, vector<1x128xf32>
    %5 = vector.broadcast %4 : vector<1x128xf32> to vector<32x128xf32>
    %6 = arith.addf %3, %5 : vector<32x128xf32>
    %cst_6 = arith.constant 0.000000e+00 : f32
    %7 = vector.broadcast %cst_6 : f32 to vector<32x128xf32>
    %8 = arith.maximumf %6, %7 : vector<32x128xf32>
    %9 = arith.truncf %8 : vector<32x128xf32> to vector<32x128xbf16>
    %c1024 = arith.constant 1024 : index
    %c0_7 = arith.constant 0 : index
    %10 = vector.load %arg3[%c1024, %c0_7] : memref<1408x128xbf16, #tpu.memory_space<vmem>>, vector<128x32xbf16>
    %cst_8 = arith.constant dense<0.000000e+00> : vector<32x32xf32>
    %11 = tpu.matmul %9, %10, %cst_8 {dimension_numbers = #tpu.dot_dimension_numbers<[1], [0], [0], [1], [0, 0, 1, 1], [], []>} : vector<32x128xbf16>, vector<128x32xbf16>, vector<32x32xf32> -> vector<32x32xf32>
    %c1 = arith.constant 1 : index
    %c0_9 = arith.constant 0 : index
    %12 = vector.load %arg4[%c1, %c0_9] : memref<8x128xf32, #tpu.memory_space<vmem>>, vector<1x32xf32>
    %13 = vector.broadcast %12 : vector<1x32xf32> to vector<32x32xf32>
    %14 = arith.addf %11, %13 : vector<32x32xf32>
    %cst_10 = arith.constant 0.000000e+00 : f32
    %15 = vector.broadcast %cst_10 : f32 to vector<32x32xf32>
    %16 = arith.maximumf %14, %15 : vector<32x32xf32>
    %17 = vector.extract_strided_slice %16 {offsets = [0, 0], sizes = [8, 32], strides = [1, 1]} : vector<32x32xf32> to vector<8x32xf32>
    %c0_11 = arith.constant 0 : index
    %c0_12 = arith.constant 0 : index
    %18 = vector.load %arg6[%c0_11, %c0_12] : memref<8x128xf32, #tpu.memory_space<vmem>>, vector<8x32xf32>
    tpu.vector_store %arg6[%c0_11, %c0_12], %17 {strides = array<i32>} : memref<8x128xf32, #tpu.memory_space<vmem>>, vector<8x32xf32>,
    %19 = vector.extract_strided_slice %16 {offsets = [8, 0], sizes = [8, 32], strides = [1, 1]} : vector<32x32xf32> to vector<8x32xf32>
    %c0_13 = arith.constant 0 : index
    %c32 = arith.constant 32 : index
    %20 = vector.load %arg6[%c0_13, %c32] : memref<8x128xf32, #tpu.memory_space<vmem>>, vector<8x32xf32>
    tpu.vector_store %arg6[%c0_13, %c32], %19 {strides = array<i32>} : memref<8x128xf32, #tpu.memory_space<vmem>>, vector<8x32xf32>,
    %21 = vector.extract_strided_slice %16 {offsets = [16, 0], sizes = [8, 32], strides = [1, 1]} : vector<32x32xf32> to vector<8x32xf32>
    %c0_14 = arith.constant 0 : index
    %c64 = arith.constant 64 : index
    %22 = vector.load %arg6[%c0_14, %c64] : memref<8x128xf32, #tpu.memory_space<vmem>>, vector<8x32xf32>
    tpu.vector_store %arg6[%c0_14, %c64], %21 {strides = array<i32>} : memref<8x128xf32, #tpu.memory_space<vmem>>, vector<8x32xf32>,
    %23 = vector.extract_strided_slice %16 {offsets = [24, 0], sizes = [8, 32], strides = [1, 1]} : vector<32x32xf32> to vector<8x32xf32>
    %c0_15 = arith.constant 0 : index
    %c96 = arith.constant 96 : index
    %24 = vector.load %arg6[%c0_15, %c96] : memref<8x128xf32, #tpu.memory_space<vmem>>, vector<8x32xf32>
    tpu.vector_store %arg6[%c0_15, %c96], %23 {strides = array<i32>} : memref<8x128xf32, #tpu.memory_space<vmem>>, vector<8x32xf32>,
    %c0_16 = arith.constant 0 : index
    %c0_17 = arith.constant 0 : index
    %25 = vector.load %arg6[%c0_16, %c0_17] : memref<8x128xf32, #tpu.memory_space<vmem>>, vector<8x128xf32>
    %26 = arith.truncf %25 : vector<8x128xf32> to vector<8x128xbf16>
    %c1152 = arith.constant 1152 : index
    %c0_18 = arith.constant 0 : index
    %27 = vector.load %arg3[%c1152, %c0_18] : memref<1408x128xbf16, #tpu.memory_space<vmem>>, vector<128x64xbf16>
    %cst_19 = arith.constant dense<0.000000e+00> : vector<8x64xf32>
    %28 = tpu.matmul %26, %27, %cst_19 {dimension_numbers = #tpu.dot_dimension_numbers<[1], [0], [0], [1], [0, 0, 1, 1], [], []>} : vector<8x128xbf16>, vector<128x64xbf16>, vector<8x64xf32> -> vector<8x64xf32>
    %c2 = arith.constant 2 : index
    %c0_20 = arith.constant 0 : index
    %29 = vector.load %arg4[%c2, %c0_20] : memref<8x128xf32, #tpu.memory_space<vmem>>, vector<1x64xf32>
    %30 = vector.broadcast %29 : vector<1x64xf32> to vector<8x64xf32>
    %31 = arith.addf %28, %30 : vector<8x64xf32>
    %cst_21 = arith.constant 0.000000e+00 : f32
    %32 = vector.broadcast %cst_21 : f32 to vector<8x64xf32>
    %33 = arith.maximumf %31, %32 : vector<8x64xf32>
    %c0_22 = arith.constant 0 : index
    %c0_23 = arith.constant 0 : index
    %34 = vector.load %arg2[%c0_22, %c0_23] : memref<8x64xf32, #tpu.memory_space<vmem>>, vector<8x64xf32>
    %35 = arith.mulf %33, %34 : vector<8x64xf32>
    %36 = arith.truncf %35 : vector<8x64xf32> to vector<8x64xbf16>
    %c1280 = arith.constant 1280 : index
    %c0_24 = arith.constant 0 : index
    %37 = vector.load %arg3[%c1280, %c0_24] : memref<1408x128xbf16, #tpu.memory_space<vmem>>, vector<64x64xbf16>
    %cst_25 = arith.constant dense<0.000000e+00> : vector<8x64xf32>
    %38 = tpu.matmul %36, %37, %cst_25 {dimension_numbers = #tpu.dot_dimension_numbers<[1], [0], [0], [1], [0, 0, 1, 1], [], []>} : vector<8x64xbf16>, vector<64x64xbf16>, vector<8x64xf32> -> vector<8x64xf32>
    %c3 = arith.constant 3 : index
    %c0_26 = arith.constant 0 : index
    %39 = vector.load %arg4[%c3, %c0_26] : memref<8x128xf32, #tpu.memory_space<vmem>>, vector<1x64xf32>
    %40 = vector.broadcast %39 : vector<1x64xf32> to vector<8x64xf32>
    %41 = arith.addf %38, %40 : vector<8x64xf32>
    %cst_27 = arith.constant 0.000000e+00 : f32
    %42 = vector.broadcast %cst_27 : f32 to vector<8x64xf32>
    %43 = arith.maximumf %41, %42 : vector<8x64xf32>
    %44 = arith.truncf %43 : vector<8x64xf32> to vector<8x64xbf16>
    %c1344 = arith.constant 1344 : index
    %c0_28 = arith.constant 0 : index
    %45 = vector.load %arg3[%c1344, %c0_28] : memref<1408x128xbf16, #tpu.memory_space<vmem>>, vector<64x8xbf16>
    %cst_29 = arith.constant dense<0.000000e+00> : vector<8x8xf32>
    %46 = tpu.matmul %44, %45, %cst_29 {dimension_numbers = #tpu.dot_dimension_numbers<[1], [0], [0], [1], [0, 0, 1, 1], [], []>} : vector<8x64xbf16>, vector<64x8xbf16>, vector<8x8xf32> -> vector<8x8xf32>
    %c4 = arith.constant 4 : index
    %c0_30 = arith.constant 0 : index
    %47 = vector.load %arg4[%c4, %c0_30] : memref<8x128xf32, #tpu.memory_space<vmem>>, vector<1x8xf32>
    %48 = vector.broadcast %47 : vector<1x8xf32> to vector<8x8xf32>
    %49 = arith.addf %46, %48 : vector<8x8xf32>
    %c0_31 = arith.constant 0 : index
    %c0_32 = arith.constant 0 : index
    %50 = vector.load %arg5[%c0_31, %c0_32] : memref<8x8xf32, #tpu.memory_space<vmem>>, vector<8x8xf32>
    tpu.vector_store %arg5[%c0_31, %c0_32], %49 {strides = array<i32>} : memref<8x8xf32, #tpu.memory_space<vmem>>, vector<8x8xf32>,
    return
  }
  func.func @transform_0(%arg0: i32) -> (i32, i32, i32) {
    %c0_i32 = arith.constant 0 : i32
    %c0_i32_0 = arith.constant 0 : i32
    %c0_i32_1 = arith.constant 0 : i32
    return %c0_i32, %arg0, %c0_i32_0 : i32, i32, i32
  }
  func.func @transform_1(%arg0: i32) -> (i32, i32) {
    %c0_i32 = arith.constant 0 : i32
    %c0_i32_0 = arith.constant 0 : i32
    return %arg0, %c0_i32 : i32, i32
  }
  func.func @transform_2(%arg0: i32) -> (i32, i32) {
    %c0_i32 = arith.constant 0 : i32
    %c0_i32_0 = arith.constant 0 : i32
    %c0_i32_1 = arith.constant 0 : i32
    return %c0_i32, %c0_i32_0 : i32, i32
  }
  func.func @transform_3(%arg0: i32) -> (i32, i32) {
    %c0_i32 = arith.constant 0 : i32
    %c0_i32_0 = arith.constant 0 : i32
    %c0_i32_1 = arith.constant 0 : i32
    return %c0_i32, %c0_i32_0 : i32, i32
  }
  func.func @transform_4(%arg0: i32) -> (i32, i32) {
    %c0_i32 = arith.constant 0 : i32
    %c0_i32_0 = arith.constant 0 : i32
    return %arg0, %c0_i32 : i32, i32
  }
}

</mosaic_0001>

<llo_original>
// kernel: _lambda_.1
$region0: #{_lambda_.1}
  #allocation0 [shape = 'u32[]', space=smem, size = 0x4, offset = 0x4, fixed_abs, tag = 'smem constant byte address 0x4 - core index']
  #allocation1 [shape = 'u32[144,128]{1,0:T(1,128)}', space=vmem, size = 0x12000, scoped, tag = 'internal scratch']
  #allocation2 [shape = 'f32[8,128]{1,0:T(8,128)}', space=vmem, size = 0x1000, scoped, tag = 'scratch operand']
  %s0 = inlined_call_operand.vmem [shape: bf16[4,8,1024], index: 0, kind: input, shape index: {}]
  %s1 = inlined_call_operand.vmem [shape: f32[8,64], index: 1, kind: input, shape index: {}]
  %s2 = inlined_call_operand.vmem [shape: bf16[1408,128], index: 2, kind: input, shape index: {}]
  %s3 = inlined_call_operand.vmem [shape: f32[8,128], index: 3, kind: input, shape index: {}]
  %s4 = inlined_call_operand.vmem [shape: f32[8,8], index: 4, kind: output, shape index: {}]
  %s5 = sld [smem:[#allocation0]]
  $region26: #{_lambda_.1} parent=0
    _
  %s7 = ssub.s32 1, %s5
  %s8 = scalar_select 0, %s7, %s5
  // Predicated region
  $region2: #{_lambda_.1} parent=0 // pred_check
    _
  $region3: #{_lambda_.1} parent=0 // pred_check_branch
    %10 = sbr.rel (0) target = $region5
  $region4: #{_lambda_.1} parent=0 // pred_region
    _
  $region5: #{_lambda_.1} parent=0 // pred_fallthru
    _
  // Predicated region
  $region6: #{_lambda_.1} parent=0 // pred_check
    _
  $region7: #{_lambda_.1} parent=0 // pred_check_branch
    %12 = sbr.rel (0) target = $region9
  $region8: #{_lambda_.1} parent=0 // pred_region
    _
  $region9: #{_lambda_.1} parent=0 // pred_fallthru
    _
  // Predicated region
  $region10: #{_lambda_.1} parent=0 // pred_check
    _
  $region11: #{_lambda_.1} parent=0 // pred_check_branch
    %14 = sbr.rel (0) target = $region13
  $region12: #{_lambda_.1} parent=0 // pred_region
    _
  $region13: #{_lambda_.1} parent=0 // pred_fallthru
    _
  // Predicated region
  $region14: #{_lambda_.1} parent=0 // pred_check
    _
  $region15: #{_lambda_.1} parent=0 // pred_check_branch
    %16 = sbr.rel (0) target = $region17
  $region16: #{_lambda_.1} parent=0 // pred_region
    _
  $region17: #{_lambda_.1} parent=0 // pred_fallthru
    _
  %v18 = vld [vmem:[%s0] sm:$0xff]
  %v19 = vld [vmem:[%s0 + $0x8] sm:$0xff]
  %v20 = vld [vmem:[%s0 + $0x10] sm:$0xff]
  %v21 = vld [vmem:[%s0 + $0x18] sm:$0xff]
  %v22 = vld [vmem:[%s0 + $0x20] sm:$0xff]
  %v23 = vld [vmem:[%s0 + $0x28] sm:$0xff]
  %v24 = vld [vmem:[%s0 + $0x30] sm:$0xff]
  %v25 = vld [vmem:[%s0 + $0x38] sm:$0xff]
  %v26 = vld [vmem:[%s0 + $0x40] sm:$0xff]
  %v27 = vld [vmem:[%s0 + $0x48] sm:$0xff]
  %v28 = vld [vmem:[%s0 + $0x50] sm:$0xff]
  %v29 = vld [vmem:[%s0 + $0x58] sm:$0xff]
  %v30 = vld [vmem:[%s0 + $0x60] sm:$0xff]
  %v31 = vld [vmem:[%s0 + $0x68] sm:$0xff]
  %v32 = vld [vmem:[%s0 + $0x70] sm:$0xff]
  %v33 = vld [vmem:[%s0 + $0x78] sm:$0xff]
  %v34 = vld [vmem:[%s2] sm:$0xf]
  %v35 = vld [vmem:[%s2 + $0x4] sm:$0xf]
  %v36 = vld [vmem:[%s2 + $0x8] sm:$0xf]
  %v37 = vld [vmem:[%s2 + $0xc] sm:$0xf]
  %v38 = vld [vmem:[%s2 + $0x10] sm:$0xf]
  %v39 = vld [vmem:[%s2 + $0x14] sm:$0xf]
  %v40 = vld [vmem:[%s2 + $0x18] sm:$0xf]
  %v41 = vld [vmem:[%s2 + $0x1c] sm:$0xf]
  %v42 = vld [vmem:[%s2 + $0x20] sm:$0xf]
  %v43 = vld [vmem:[%s2 + $0x24] sm:$0xf]
  %v44 = vld [vmem:[%s2 + $0x28] sm:$0xf]
  %v45 = vld [vmem:[%s2 + $0x2c] sm:$0xf]
  %v46 = vld [vmem:[%s2 + $0x30] sm:$0xf]
  %v47 = vld [vmem:[%s2 + $0x34] sm:$0xf]
  %v48 = vld [vmem:[%s2 + $0x38] sm:$0xf]
  %v49 = vld [vmem:[%s2 + $0x3c] sm:$0xf]
  %v50 = vld [vmem:[%s2 + $0x40] sm:$0xf]
  %v51 = vld [vmem:[%s2 + $0x44] sm:$0xf]
  %v52 = vld [vmem:[%s2 + $0x48] sm:$0xf]
  %v53 = vld [vmem:[%s2 + $0x4c] sm:$0xf]
  %v54 = vld [vmem:[%s2 + $0x50] sm:$0xf]
  %v55 = vld [vmem:[%s2 + $0x54] sm:$0xf]
  %v56 = vld [vmem:[%s2 + $0x58] sm:$0xf]
  %v57 = vld [vmem:[%s2 + $0x5c] sm:$0xf]
  %v58 = vld [vmem:[%s2 + $0x60] sm:$0xf]
  %v59 = vld [vmem:[%s2 + $0x64] sm:$0xf]
  %v60 = vld [vmem:[%s2 + $0x68] sm:$0xf]
  %v61 = vld [vmem:[%s2 + $0x6c] sm:$0xf]
  %v62 = vld [vmem:[%s2 + $0x70] sm:$0xf]
  %v63 = vld [vmem:[%s2 + $0x74] sm:$0xf]
  %v64 = vld [vmem:[%s2 + $0x78] sm:$0xf]
  %v65 = vld [vmem:[%s2 + $0x7c] sm:$0xf]
  %v66 = vld [vmem:[%s2 + $0x80] sm:$0xf]
  %v67 = vld [vmem:[%s2 + $0x84] sm:$0xf]
  %v68 = vld [vmem:[%s2 + $0x88] sm:$0xf]
  %v69 = vld [vmem:[%s2 + $0x8c] sm:$0xf]
  %v70 = vld [vmem:[%s2 + $0x90] sm:$0xf]
  %v71 = vld [vmem:[%s2 + $0x94] sm:$0xf]
  %v72 = vld [vmem:[%s2 + $0x98] sm:$0xf]
  %v73 = vld [vmem:[%s2 + $0x9c] sm:$0xf]
  %v74 = vld [vmem:[%s2 + $0xa0] sm:$0xf]
  %v75 = vld [vmem:[%s2 + $0xa4] sm:$0xf]
  %v76 = vld [vmem:[%s2 + $0xa8] sm:$0xf]
  %v77 = vld [vmem:[%s2 + $0xac] sm:$0xf]
  %v78 = vld [vmem:[%s2 + $0xb0] sm:$0xf]
  %v79 = vld [vmem:[%s2 + $0xb4] sm:$0xf]
  %v80 = vld [vmem:[%s2 + $0xb8] sm:$0xf]
  %v81 = vld [vmem:[%s2 + $0xbc] sm:$0xf]
  %v82 = vld [vmem:[%s2 + $0xc0] sm:$0xf]
  %v83 = vld [vmem:[%s2 + $0xc4] sm:$0xf]
  %v84 = vld [vmem:[%s2 + $0xc8] sm:$0xf]
  %v85 = vld [vmem:[%s2 + $0xcc] sm:$0xf]
  %v86 = vld [vmem:[%s2 + $0xd0] sm:$0xf]
  %v87 = vld [vmem:[%s2 + $0xd4] sm:$0xf]
  %v88 = vld [vmem:[%s2 + $0xd8] sm:$0xf]
  %v89 = vld [vmem:[%s2 + $0xdc] sm:$0xf]
  %v90 = vld [vmem:[%s2 + $0xe0] sm:$0xf]
  %v91 = vld [vmem:[%s2 + $0xe4] sm:$0xf]
  %v92 = vld [vmem:[%s2 + $0xe8] sm:$0xf]
  %v93 = vld [vmem:[%s2 + $0xec] sm:$0xf]
  %v94 = vld [vmem:[%s2 + $0xf0] sm:$0xf]
  %v95 = vld [vmem:[%s2 + $0xf4] sm:$0xf]
  %v96 = vld [vmem:[%s2 + $0xf8] sm:$0xf]
  %v97 = vld [vmem:[%s2 + $0xfc] sm:$0xf]
  %v98 = vld [vmem:[%s2 + $0x100] sm:$0xf]
  %v99 = vld [vmem:[%s2 + $0x104] sm:$0xf]
  %v100 = vld [vmem:[%s2 + $0x108] sm:$0xf]
  %v101 = vld [vmem:[%s2 + $0x10c] sm:$0xf]
  %v102 = vld [vmem:[%s2 + $0x110] sm:$0xf]
  %v103 = vld [vmem:[%s2 + $0x114] sm:$0xf]
  %v104 = vld [vmem:[%s2 + $0x118] sm:$0xf]
  %v105 = vld [vmem:[%s2 + $0x11c] sm:$0xf]
  %v106 = vld [vmem:[%s2 + $0x120] sm:$0xf]
  %v107 = vld [vmem:[%s2 + $0x124] sm:$0xf]
  %v108 = vld [vmem:[%s2 + $0x128] sm:$0xf]
  %v109 = vld [vmem:[%s2 + $0x12c] sm:$0xf]
  %v110 = vld [vmem:[%s2 + $0x130] sm:$0xf]
  %v111 = vld [vmem:[%s2 + $0x134] sm:$0xf]
  %v112 = vld [vmem:[%s2 + $0x138] sm:$0xf]
  %v113 = vld [vmem:[%s2 + $0x13c] sm:$0xf]
  %v114 = vld [vmem:[%s2 + $0x140] sm:$0xf]
  %v115 = vld [vmem:[%s2 + $0x144] sm:$0xf]
  %v116 = vld [vmem:[%s2 + $0x148] sm:$0xf]
  %v117 = vld [vmem:[%s2 + $0x14c] sm:$0xf]
  %v118 = vld [vmem:[%s2 + $0x150] sm:$0xf]
  %v119 = vld [vmem:[%s2 + $0x154] sm:$0xf]
  %v120 = vld [vmem:[%s2 + $0x158] sm:$0xf]
  %v121 = vld [vmem:[%s2 + $0x15c] sm:$0xf]
  %v122 = vld [vmem:[%s2 + $0x160] sm:$0xf]
  %v123 = vld [vmem:[%s2 + $0x164] sm:$0xf]
  %v124 = vld [vmem:[%s2 + $0x168] sm:$0xf]
  %v125 = vld [vmem:[%s2 + $0x16c] sm:$0xf]
  %v126 = vld [vmem:[%s2 + $0x170] sm:$0xf]
  %v127 = vld [vmem:[%s2 + $0x174] sm:$0xf]
  %v128 = vld [vmem:[%s2 + $0x178] sm:$0xf]
  %v129 = vld [vmem:[%s2 + $0x17c] sm:$0xf]
  %v130 = vld [vmem:[%s2 + $0x180] sm:$0xf]
  %v131 = vld [vmem:[%s2 + $0x184] sm:$0xf]
  %v132 = vld [vmem:[%s2 + $0x188] sm:$0xf]
  %v133 = vld [vmem:[%s2 + $0x18c] sm:$0xf]
  %v134 = vld [vmem:[%s2 + $0x190] sm:$0xf]
  %v135 = vld [vmem:[%s2 + $0x194] sm:$0xf]
  %v136 = vld [vmem:[%s2 + $0x198] sm:$0xf]
  %v137 = vld [vmem:[%s2 + $0x19c] sm:$0xf]
  %v138 = vld [vmem:[%s2 + $0x1a0] sm:$0xf]
  %v139 = vld [vmem:[%s2 + $0x1a4] sm:$0xf]
  %v140 = vld [vmem:[%s2 + $0x1a8] sm:$0xf]
  %v141 = vld [vmem:[%s2 + $0x1ac] sm:$0xf]
  %v142 = vld [vmem:[%s2 + $0x1b0] sm:$0xf]
  %v143 = vld [vmem:[%s2 + $0x1b4] sm:$0xf]
  %v144 = vld [vmem:[%s2 + $0x1b8] sm:$0xf]
  %v145 = vld [vmem:[%s2 + $0x1bc] sm:$0xf]
  %v146 = vld [vmem:[%s2 + $0x1c0] sm:$0xf]
  %v147 = vld [vmem:[%s2 + $0x1c4] sm:$0xf]
  %v148 = vld [vmem:[%s2 + $0x1c8] sm:$0xf]
  %v149 = vld [vmem:[%s2 + $0x1cc] sm:$0xf]
  %v150 = vld [vmem:[%s2 + $0x1d0] sm:$0xf]
  %v151 = vld [vmem:[%s2 + $0x1d4] sm:$0xf]
  %v152 = vld [vmem:[%s2 + $0x1d8] sm:$0xf]
  %v153 = vld [vmem:[%s2 + $0x1dc] sm:$0xf]
  %v154 = vld [vmem:[%s2 + $0x1e0] sm:$0xf]
  %v155 = vld [vmem:[%s2 + $0x1e4] sm:$0xf]
  %v156 = vld [vmem:[%s2 + $0x1e8] sm:$0xf]
  %v157 = vld [vmem:[%s2 + $0x1ec] sm:$0xf]
  %v158 = vld [vmem:[%s2 + $0x1f0] sm:$0xf]
  %v159 = vld [vmem:[%s2 + $0x1f4] sm:$0xf]
  %v160 = vld [vmem:[%s2 + $0x1f8] sm:$0xf]
  %v161 = vld [vmem:[%s2 + $0x1fc] sm:$0xf]
  %v162 = vld [vmem:[%s3] sm:$0x1]
  %v163 = vlaneseq
  %v164 = vshrl.u32 %v163, 7
  %v165 = vsub.s32 0, %v164
  %v166 = vrot.slane %v162, %v165
  %v183 = vunpack.c.l.b16 %v18
  %v184 = vunpack.c.h.b16 %v18
  %v185 = vunpack.c.l.b16 %v19
  %v186 = vunpack.c.h.b16 %v19
  %v187 = vunpack.c.l.b16 %v20
  %v188 = vunpack.c.h.b16 %v20
  %v189 = vunpack.c.l.b16 %v21
  %v190 = vunpack.c.h.b16 %v21
  %v191 = vunpack.c.l.b16 %v22
  %v192 = vunpack.c.h.b16 %v22
  %v193 = vunpack.c.l.b16 %v23
  %v194 = vunpack.c.h.b16 %v23
  %v195 = vunpack.c.l.b16 %v24
  %v196 = vunpack.c.h.b16 %v24
  %v197 = vunpack.c.l.b16 %v25
  %v198 = vunpack.c.h.b16 %v25
  %v199 = vunpack.c.l.b16 %v26
  %v200 = vunpack.c.h.b16 %v26
  %v201 = vunpack.c.l.b16 %v27
  %v202 = vunpack.c.h.b16 %v27
  %v203 = vunpack.c.l.b16 %v28
  %v204 = vunpack.c.h.b16 %v28
  %v205 = vunpack.c.l.b16 %v29
  %v206 = vunpack.c.h.b16 %v29
  %v207 = vunpack.c.l.b16 %v30
  %v208 = vunpack.c.h.b16 %v30
  %v209 = vunpack.c.l.b16 %v31
  %v210 = vunpack.c.h.b16 %v31
  %v211 = vunpack.c.l.b16 %v32
  %v212 = vunpack.c.h.b16 %v32
  %v213 = vunpack.c.l.b16 %v33
  %v214 = vunpack.c.h.b16 %v33
  %v215 = vpack.c.b16 %v191, %v183
  %v216 = vpack.c.b16 %v192, %v184
  %v217 = vpack.c.b16 %v193, %v185
  %v218 = vpack.c.b16 %v194, %v186
  %v219 = vpack.c.b16 %v195, %v187
  %v220 = vpack.c.b16 %v196, %v188
  %v221 = vpack.c.b16 %v197, %v189
  %v222 = vpack.c.b16 %v198, %v190
  %v223 = vpack.c.b16 %v207, %v199
  %v224 = vpack.c.b16 %v208, %v200
  %v225 = vpack.c.b16 %v209, %v201
  %v226 = vpack.c.b16 %v210, %v202
  %v227 = vpack.c.b16 %v211, %v203
  %v228 = vpack.c.b16 %v212, %v204
  %v229 = vpack.c.b16 %v213, %v205
  %v230 = vpack.c.b16 %v214, %v206
  %v375 = vunpack.c.l.b16 %v34
  %v376 = vunpack.c.l.b16 %v35
  %v377 = vunpack.c.l.b16 %v36
  %v378 = vunpack.c.l.b16 %v37
  %v379 = vunpack.c.l.b16 %v38
  %v380 = vunpack.c.l.b16 %v39
  %v381 = vunpack.c.l.b16 %v40
  %v382 = vunpack.c.l.b16 %v41
  %v383 = vunpack.c.l.b16 %v42
  %v384 = vunpack.c.l.b16 %v43
  %v385 = vunpack.c.l.b16 %v44
  %v386 = vunpack.c.l.b16 %v45
  %v387 = vunpack.c.l.b16 %v46
  %v388 = vunpack.c.l.b16 %v47
  %v389 = vunpack.c.l.b16 %v48
  %v390 = vunpack.c.l.b16 %v49
  %v391 = vunpack.c.l.b16 %v50
  %v392 = vunpack.c.l.b16 %v51
  %v393 = vunpack.c.l.b16 %v52
  %v394 = vunpack.c.l.b16 %v53
  %v395 = vunpack.c.l.b16 %v54
  %v396 = vunpack.c.l.b16 %v55
  %v397 = vunpack.c.l.b16 %v56
  %v398 = vunpack.c.l.b16 %v57
  %v399 = vunpack.c.l.b16 %v58
  %v400 = vunpack.c.l.b16 %v59
  %v401 = vunpack.c.l.b16 %v60
  %v402 = vunpack.c.l.b16 %v61
  %v403 = vunpack.c.l.b16 %v62
  %v404 = vunpack.c.l.b16 %v63
  %v405 = vunpack.c.l.b16 %v64
  %v406 = vunpack.c.l.b16 %v65
  %v407 = vunpack.c.l.b16 %v66
  %v408 = vunpack.c.l.b16 %v67
  %v409 = vunpack.c.l.b16 %v68
  %v410 = vunpack.c.l.b16 %v69
  %v411 = vunpack.c.l.b16 %v70
  %v412 = vunpack.c.l.b16 %v71
  %v413 = vunpack.c.l.b16 %v72
  %v414 = vunpack.c.l.b16 %v73
  %v415 = vunpack.c.l.b16 %v74
  %v416 = vunpack.c.l.b16 %v75
  %v417 = vunpack.c.l.b16 %v76
  %v418 = vunpack.c.l.b16 %v77
  %v419 = vunpack.c.l.b16 %v78
  %v420 = vunpack.c.l.b16 %v79
  %v421 = vunpack.c.l.b16 %v80
  %v422 = vunpack.c.l.b16 %v81
  %v423 = vunpack.c.l.b16 %v82
  %v424 = vunpack.c.l.b16 %v83
  %v425 = vunpack.c.l.b16 %v84
  %v426 = vunpack.c.l.b16 %v85
  %v427 = vunpack.c.l.b16 %v86
  %v428 = vunpack.c.l.b16 %v87
  %v429 = vunpack.c.l.b16 %v88
  %v430 = vunpack.c.l.b16 %v89
  %v431 = vunpack.c.l.b16 %v90
  %v432 = vunpack.c.l.b16 %v91
  %v433 = vunpack.c.l.b16 %v92
  %v434 = vunpack.c.l.b16 %v93
  %v435 = vunpack.c.l.b16 %v94
  %v436 = vunpack.c.l.b16 %v95
  %v437 = vunpack.c.l.b16 %v96
  %v438 = vunpack.c.l.b16 %v97
  %v439 = vunpack.c.l.b16 %v98
  %v440 = vunpack.c.l.b16 %v99
  %v441 = vunpack.c.l.b16 %v100
  %v442 = vunpack.c.l.b16 %v101
  %v443 = vunpack.c.l.b16 %v102
  %v444 = vunpack.c.l.b16 %v103
  %v445 = vunpack.c.l.b16 %v104
  %v446 = vunpack.c.l.b16 %v105
  %v447 = vunpack.c.l.b16 %v106
  %v448 = vunpack.c.l.b16 %v107
  %v449 = vunpack.c.l.b16 %v108
  %v450 = vunpack.c.l.b16 %v109
  %v451 = vunpack.c.l.b16 %v110
  %v452 = vunpack.c.l.b16 %v111
  %v453 = vunpack.c.l.b16 %v112
  %v454 = vunpack.c.l.b16 %v113
  %v455 = vunpack.c.l.b16 %v114
  %v456 = vunpack.c.l.b16 %v115
  %v457 = vunpack.c.l.b16 %v116
  %v458 = vunpack.c.l.b16 %v117
  %v459 = vunpack.c.l.b16 %v118
  %v460 = vunpack.c.l.b16 %v119
  %v461 = vunpack.c.l.b16 %v120
  %v462 = vunpack.c.l.b16 %v121
  %v463 = vunpack.c.l.b16 %v122
  %v464 = vunpack.c.l.b16 %v123
  %v465 = vunpack.c.l.b16 %v124
  %v466 = vunpack.c.l.b16 %v125
  %v467 = vunpack.c.l.b16 %v126
  %v468 = vunpack.c.l.b16 %v127
  %v469 = vunpack.c.l.b16 %v128
  %v470 = vunpack.c.l.b16 %v129
  %v471 = vunpack.c.l.b16 %v130
  %v472 = vunpack.c.l.b16 %v131
  %v473 = vunpack.c.l.b16 %v132
  %v474 = vunpack.c.l.b16 %v133
  %v475 = vunpack.c.l.b16 %v134
  %v476 = vunpack.c.l.b16 %v135
  %v477 = vunpack.c.l.b16 %v136
  %v478 = vunpack.c.l.b16 %v137
  %v479 = vunpack.c.l.b16 %v138
  %v480 = vunpack.c.l.b16 %v139
  %v481 = vunpack.c.l.b16 %v140
  %v482 = vunpack.c.l.b16 %v141
  %v483 = vunpack.c.l.b16 %v142
  %v484 = vunpack.c.l.b16 %v143
  %v485 = vunpack.c.l.b16 %v144
  %v486 = vunpack.c.l.b16 %v145
  %v487 = vunpack.c.l.b16 %v146
  %v488 = vunpack.c.l.b16 %v147
  %v489 = vunpack.c.l.b16 %v148
  %v490 = vunpack.c.l.b16 %v149
  %v491 = vunpack.c.l.b16 %v150
  %v492 = vunpack.c.l.b16 %v151
  %v493 = vunpack.c.l.b16 %v152
  %v494 = vunpack.c.l.b16 %v153
  %v495 = vunpack.c.l.b16 %v154
  %v496 = vunpack.c.l.b16 %v155
  %v497 = vunpack.c.l.b16 %v156
  %v498 = vunpack.c.l.b16 %v157
  %v499 = vunpack.c.l.b16 %v158
  %v500 = vunpack.c.l.b16 %v159
  %v501 = vunpack.c.l.b16 %v160
  %v502 = vunpack.c.l.b16 %v161
  %v503 = vpack.c.b16 %v376, %v375
  %v504 = vpack.c.b16 %v378, %v377
  %v505 = vpack.c.b16 %v380, %v379
  %v506 = vpack.c.b16 %v382, %v381
  %v507 = vpack.c.b16 %v384, %v383
  %v508 = vpack.c.b16 %v386, %v385
  %v509 = vpack.c.b16 %v388, %v387
  %v510 = vpack.c.b16 %v390, %v389
  %v511 = vpack.c.b16 %v392, %v391
  %v512 = vpack.c.b16 %v394, %v393
  %v513 = vpack.c.b16 %v396, %v395
  %v514 = vpack.c.b16 %v398, %v397
  %v515 = vpack.c.b16 %v400, %v399
  %v516 = vpack.c.b16 %v402, %v401
  %v517 = vpack.c.b16 %v404, %v403
  %v518 = vpack.c.b16 %v406, %v405
  %v519 = vpack.c.b16 %v408, %v407
  %v520 = vpack.c.b16 %v410, %v409
  %v521 = vpack.c.b16 %v412, %v411
  %v522 = vpack.c.b16 %v414, %v413
  %v523 = vpack.c.b16 %v416, %v415
  %v524 = vpack.c.b16 %v418, %v417
  %v525 = vpack.c.b16 %v420, %v419
  %v526 = vpack.c.b16 %v422, %v421
  %v527 = vpack.c.b16 %v424, %v423
  %v528 = vpack.c.b16 %v426, %v425
  %v529 = vpack.c.b16 %v428, %v427
  %v530 = vpack.c.b16 %v430, %v429
  %v531 = vpack.c.b16 %v432, %v431
  %v532 = vpack.c.b16 %v434, %v433
  %v533 = vpack.c.b16 %v436, %v435
  %v534 = vpack.c.b16 %v438, %v437
  %v535 = vpack.c.b16 %v440, %v439
  %v536 = vpack.c.b16 %v442, %v441
  %v537 = vpack.c.b16 %v444, %v443
  %v538 = vpack.c.b16 %v446, %v445
  %v539 = vpack.c.b16 %v448, %v447
  %v540 = vpack.c.b16 %v450, %v449
  %v541 = vpack.c.b16 %v452, %v451
  %v542 = vpack.c.b16 %v454, %v453
  %v543 = vpack.c.b16 %v456, %v455
  %v544 = vpack.c.b16 %v458, %v457
  %v545 = vpack.c.b16 %v460, %v459
  %v546 = vpack.c.b16 %v462, %v461
  %v547 = vpack.c.b16 %v464, %v463
  %v548 = vpack.c.b16 %v466, %v465
  %v549 = vpack.c.b16 %v468, %v467
  %v550 = vpack.c.b16 %v470, %v469
  %v551 = vpack.c.b16 %v472, %v471
  %v552 = vpack.c.b16 %v474, %v473
  %v553 = vpack.c.b16 %v476, %v475
  %v554 = vpack.c.b16 %v478, %v477
  %v555 = vpack.c.b16 %v480, %v479
  %v556 = vpack.c.b16 %v482, %v481
  %v557 = vpack.c.b16 %v484, %v483
  %v558 = vpack.c.b16 %v486, %v485
  %v559 = vpack.c.b16 %v488, %v487
  %v560 = vpack.c.b16 %v490, %v489
  %v561 = vpack.c.b16 %v492, %v491
  %v562 = vpack.c.b16 %v494, %v493
  %v563 = vpack.c.b16 %v496, %v495
  %v564 = vpack.c.b16 %v498, %v497
  %v565 = vpack.c.b16 %v500, %v499
  %v566 = vpack.c.b16 %v502, %v501
  %631 = vmatprep.subr.bf16.mxu0 0
  %632 = vmatpush1.bf16.msra.mxu0 %v510
  %633 = vmatprep.subr.bf16.mxu0 0
  %634 = vmatpush1.bf16.msra.mxu0 %v509
  %635 = vmatprep.subr.bf16.mxu0 0
  %636 = vmatpush1.bf16.msra.mxu0 %v508
  %637 = vmatprep.subr.bf16.mxu0 0
  %638 = vmatpush1.bf16.msra.mxu0 %v507
  %639 = vmatprep.subr.bf16.mxu0 0
  %640 = vmatpush1.bf16.msra.mxu0 %v506
  %641 = vmatprep.subr.bf16.mxu0 0
  %642 = vmatpush1.bf16.msra.mxu0 %v505
  %643 = vmatprep.subr.bf16.mxu0 0
  %644 = vmatpush1.bf16.msra.mxu0 %v504
  %645 = vmatprep.subr.bf16.mxu0 0
  %646 = vmatpush1.bf16.msra.mxu0 %v503
  %647 = vmatprep.subr.bf16.mxu0 0
  %648 = vmatpush2.bf16.msra.mxu0 %v518
  %649 = vmatprep.subr.bf16.mxu0 0
  %650 = vmatpush2.bf16.msra.mxu0 %v517
  %651 = vmatprep.subr.bf16.mxu0 0
  %652 = vmatpush2.bf16.msra.mxu0 %v516
  %653 = vmatprep.subr.bf16.mxu0 0
  %654 = vmatpush2.bf16.msra.mxu0 %v515
  %655 = vmatprep.subr.bf16.mxu0 0
  %656 = vmatpush2.bf16.msra.mxu0 %v514
  %657 = vmatprep.subr.bf16.mxu0 0
  %658 = vmatpush2.bf16.msra.mxu0 %v513
  %659 = vmatprep.subr.bf16.mxu0 0
  %660 = vmatpush2.bf16.msra.mxu0 %v512
  %661 = vmatprep.subr.bf16.mxu0 0
  %662 = vmatpush2.bf16.msra.mxu0 %v511
  %663 = vmatprep.mubr.bf16.mxu0 %v216
  %664 = vmatmul.mubr.bf16.gmra.mxu0 %v215
  %v665 = vpop.f32.mrf.mxu0
  %v666 = vadd.f32 %v166, %v665
  %v667 = vpop.f32.mrf.mxu0
  %v668 = vpop.f32.mrf.mxu0
  %v669 = vadd.f32 %v166, %v668
  %v670 = vpop.f32.mrf.mxu0
  %671 = vmatprep.mubr.bf16.mxu0 %v224
  %672 = vmatmul.mubr.bf16.gmra.mxu0 %v223
  %v673 = vpop.f32.mrf.mxu0
  %v674 = vadd.f32 %v166, %v673
  %v675 = vpop.f32.mrf.mxu0
  %v676 = vpop.f32.mrf.mxu0
  %v677 = vadd.f32 %v166, %v676
  %v678 = vpop.f32.mrf.mxu0
  %679 = vdwg.mxu0
  %680 = vmatprep.subr.bf16.mxu0 0
  %681 = vmatpush1.bf16.msra.mxu0 %v526
  %682 = vmatprep.subr.bf16.mxu0 0
  %683 = vmatpush1.bf16.msra.mxu0 %v525
  %684 = vmatprep.subr.bf16.mxu0 0
  %685 = vmatpush1.bf16.msra.mxu0 %v524
  %686 = vmatprep.subr.bf16.mxu0 0
  %687 = vmatpush1.bf16.msra.mxu0 %v523
  %688 = vmatprep.subr.bf16.mxu0 0
  %689 = vmatpush1.bf16.msra.mxu0 %v522
  %690 = vmatprep.subr.bf16.mxu0 0
  %691 = vmatpush1.bf16.msra.mxu0 %v521
  %692 = vmatprep.subr.bf16.mxu0 0
  %693 = vmatpush1.bf16.msra.mxu0 %v520
  %694 = vmatprep.subr.bf16.mxu0 0
  %695 = vmatpush1.bf16.msra.mxu0 %v519
  %696 = vmatprep.subr.bf16.mxu0 0
  %697 = vmatpush2.bf16.msra.mxu0 %v534
  %698 = vmatprep.subr.bf16.mxu0 0
  %699 = vmatpush2.bf16.msra.mxu0 %v533
  %700 = vmatprep.subr.bf16.mxu0 0
  %701 = vmatpush2.bf16.msra.mxu0 %v532
  %702 = vmatprep.subr.bf16.mxu0 0
  %703 = vmatpush2.bf16.msra.mxu0 %v531
  %704 = vmatprep.subr.bf16.mxu0 0
  %705 = vmatpush2.bf16.msra.mxu0 %v530
  %706 = vmatprep.subr.bf16.mxu0 0
  %707 = vmatpush2.bf16.msra.mxu0 %v529
  %708 = vmatprep.subr.bf16.mxu0 0
  %709 = vmatpush2.bf16.msra.mxu0 %v528
  %710 = vmatprep.subr.bf16.mxu0 0
  %711 = vmatpush2.bf16.msra.mxu0 %v527
  %712 = vmatprep.mubr.bf16.mxu0 %v218
  %713 = vmatmul.mubr.bf16.gmra.mxu0 %v217
  %v714 = vpop.f32.mrf.mxu0
  %v715 = vadd.f32 %v666, %v714
  %v716 = vpop.f32.mrf.mxu0
  %v717 = vpop.f32.mrf.mxu0
  %v718 = vadd.f32 %v669, %v717
  %v719 = vpop.f32.mrf.mxu0
  %720 = vmatprep.mubr.bf16.mxu0 %v226
  %721 = vmatmul.mubr.bf16.gmra.mxu0 %v225
  %v722 = vpop.f32.mrf.mxu0
  %v723 = vadd.f32 %v674, %v722
  %v724 = vpop.f32.mrf.mxu0
  %v725 = vpop.f32.mrf.mxu0
  %v726 = vadd.f32 %v677, %v725
  %v727 = vpop.f32.mrf.mxu0
  %728 = vdwg.mxu0
  %729 = vmatprep.subr.bf16.mxu0 0
  %730 = vmatpush1.bf16.msra.mxu0 %v542
  %731 = vmatprep.subr.bf16.mxu0 0
  %732 = vmatpush1.bf16.msra.mxu0 %v541
  %733 = vmatprep.subr.bf16.mxu0 0
  %734 = vmatpush1.bf16.msra.mxu0 %v540
  %735 = vmatprep.subr.bf16.mxu0 0
  %736 = vmatpush1.bf16.msra.mxu0 %v539
  %737 = vmatprep.subr.bf16.mxu0 0
  %738 = vmatpush1.bf16.msra.mxu0 %v538
  %739 = vmatprep.subr.bf16.mxu0 0
  %740 = vmatpush1.bf16.msra.mxu0 %v537
  %741 = vmatprep.subr.bf16.mxu0 0
  %742 = vmatpush1.bf16.msra.mxu0 %v536
  %743 = vmatprep.subr.bf16.mxu0 0
  %744 = vmatpush1.bf16.msra.mxu0 %v535
  %745 = vmatprep.subr.bf16.mxu0 0
  %746 = vmatpush2.bf16.msra.mxu0 %v550
  %747 = vmatprep.subr.bf16.mxu0 0
  %748 = vmatpush2.bf16.msra.mxu0 %v549
  %749 = vmatprep.subr.bf16.mxu0 0
  %750 = vmatpush2.bf16.msra.mxu0 %v548
  %751 = vmatprep.subr.bf16.mxu0 0
  %752 = vmatpush2.bf16.msra.mxu0 %v547
  %753 = vmatprep.subr.bf16.mxu0 0
  %754 = vmatpush2.bf16.msra.mxu0 %v546
  %755 = vmatprep.subr.bf16.mxu0 0
  %756 = vmatpush2.bf16.msra.mxu0 %v545
  %757 = vmatprep.subr.bf16.mxu0 0
  %758 = vmatpush2.bf16.msra.mxu0 %v544
  %759 = vmatprep.subr.bf16.mxu0 0
  %760 = vmatpush2.bf16.msra.mxu0 %v543
  %761 = vmatprep.mubr.bf16.mxu0 %v220
  %762 = vmatmul.mubr.bf16.gmra.mxu0 %v219
  %v763 = vpop.f32.mrf.mxu0
  %v764 = vadd.f32 %v715, %v763
  %v765 = vpop.f32.mrf.mxu0
  %v766 = vpop.f32.mrf.mxu0
  %v767 = vadd.f32 %v718, %v766
  %v768 = vpop.f32.mrf.mxu0
  %769 = vmatprep.mubr.bf16.mxu0 %v228
  %770 = vmatmul.mubr.bf16.gmra.mxu0 %v227
  %v771 = vpop.f32.mrf.mxu0
  %v772 = vadd.f32 %v723, %v771
  %v773 = vpop.f32.mrf.mxu0
  %v774 = vpop.f32.mrf.mxu0
  %v775 = vadd.f32 %v726, %v774
  %v776 = vpop.f32.mrf.mxu0
  %777 = vdwg.mxu0
  %778 = vmatprep.subr.bf16.mxu0 0
  %779 = vmatpush1.bf16.msra.mxu0 %v558
  %780 = vmatprep.subr.bf16.mxu0 0
  %781 = vmatpush1.bf16.msra.mxu0 %v557
  %782 = vmatprep.subr.bf16.mxu0 0
  %783 = vmatpush1.bf16.msra.mxu0 %v556
  %784 = vmatprep.subr.bf16.mxu0 0
  %785 = vmatpush1.bf16.msra.mxu0 %v555
  %786 = vmatprep.subr.bf16.mxu0 0
  %787 = vmatpush1.bf16.msra.mxu0 %v554
  %788 = vmatprep.subr.bf16.mxu0 0
  %789 = vmatpush1.bf16.msra.mxu0 %v553
  %790 = vmatprep.subr.bf16.mxu0 0
  %791 = vmatpush1.bf16.msra.mxu0 %v552
  %792 = vmatprep.subr.bf16.mxu0 0
  %793 = vmatpush1.bf16.msra.mxu0 %v551
  %794 = vmatprep.subr.bf16.mxu0 0
  %795 = vmatpush2.bf16.msra.mxu0 %v566
  %796 = vmatprep.subr.bf16.mxu0 0
  %797 = vmatpush2.bf16.msra.mxu0 %v565
  %798 = vmatprep.subr.bf16.mxu0 0
  %799 = vmatpush2.bf16.msra.mxu0 %v564
  %800 = vmatprep.subr.bf16.mxu0 0
  %801 = vmatpush2.bf16.msra.mxu0 %v563
  %802 = vmatprep.subr.bf16.mxu0 0
  %803 = vmatpush2.bf16.msra.mxu0 %v562
  %804 = vmatprep.subr.bf16.mxu0 0
  %805 = vmatpush2.bf16.msra.mxu0 %v561
  %806 = vmatprep.subr.bf16.mxu0 0
  %807 = vmatpush2.bf16.msra.mxu0 %v560
  %808 = vmatprep.subr.bf16.mxu0 0
  %809 = vmatpush2.bf16.msra.mxu0 %v559
  %810 = vmatprep.mubr.bf16.mxu0 %v222
  %811 = vmatmul.mubr.bf16.gmra.mxu0 %v221
  %v812 = vpop.f32.mrf.mxu0
  %v813 = vadd.f32 %v764, %v812
  %v814 = vpop.f32.mrf.mxu0
  %v815 = vpop.f32.mrf.mxu0
  %v816 = vadd.f32 %v767, %v815
  %v817 = vpop.f32.mrf.mxu0
  %818 = vmatprep.mubr.bf16.mxu0 %v230
  %819 = vmatmul.mubr.bf16.gmra.mxu0 %v229
  %v820 = vpop.f32.mrf.mxu0
  %v821 = vadd.f32 %v772, %v820
  %v822 = vpop.f32.mrf.mxu0
  %v823 = vpop.f32.mrf.mxu0
  %v824 = vadd.f32 %v775, %v823
  %v825 = vpop.f32.mrf.mxu0
  %826 = vdwg.mxu0
  %v827 = vmax.f32 %v813, 0.0
  %v828 = vmax.f32 %v816, 0.0
  %v829 = vmax.f32 %v821, 0.0
  %v830 = vmax.f32 %v824, 0.0
  %v831 = vpack.c.bf16 %v828, %v827
  %v832 = vpack.c.bf16 %v830, %v829
  %v833 = vld [vmem:[%s2 + $0x200] sm:$0xf]
  %v834 = vld [vmem:[%s2 + $0x204] sm:$0xf]
  %v835 = vld [vmem:[%s2 + $0x208] sm:$0xf]
  %v836 = vld [vmem:[%s2 + $0x20c] sm:$0xf]
  %v837 = vld [vmem:[%s2 + $0x210] sm:$0xf]
  %v838 = vld [vmem:[%s2 + $0x214] sm:$0xf]
  %v839 = vld [vmem:[%s2 + $0x218] sm:$0xf]
  %v840 = vld [vmem:[%s2 + $0x21c] sm:$0xf]
  %v841 = vld [vmem:[%s2 + $0x220] sm:$0xf]
  %v842 = vld [vmem:[%s2 + $0x224] sm:$0xf]
  %v843 = vld [vmem:[%s2 + $0x228] sm:$0xf]
  %v844 = vld [vmem:[%s2 + $0x22c] sm:$0xf]
  %v845 = vld [vmem:[%s2 + $0x230] sm:$0xf]
  %v846 = vld [vmem:[%s2 + $0x234] sm:$0xf]
  %v847 = vld [vmem:[%s2 + $0x238] sm:$0xf]
  %v848 = vld [vmem:[%s2 + $0x23c] sm:$0xf]
  %v849 = vld [vmem:[%s3 + $0x1] sm:$0x1]
  %v850 = vlaneseq
  %v851 = vshrl.u32 %v850, 7
  %v852 = vsub.s32 0, %v851
  %v853 = vrot.slane %v849, %v852
  %v870 = vunpack.c.l.b16 %v833
  %v871 = vunpack.c.l.b16 %v834
  %v872 = vunpack.c.l.b16 %v835
  %v873 = vunpack.c.l.b16 %v836
  %v874 = vunpack.c.l.b16 %v837
  %v875 = vunpack.c.l.b16 %v838
  %v876 = vunpack.c.l.b16 %v839
  %v877 = vunpack.c.l.b16 %v840
  %v878 = vunpack.c.l.b16 %v841
  %v879 = vunpack.c.l.b16 %v842
  %v880 = vunpack.c.l.b16 %v843
  %v881 = vunpack.c.l.b16 %v844
  %v882 = vunpack.c.l.b16 %v845
  %v883 = vunpack.c.l.b16 %v846
  %v884 = vunpack.c.l.b16 %v847
  %v885 = vunpack.c.l.b16 %v848
  %v886 = vpack.c.b16 %v871, %v870
  %v887 = vpack.c.b16 %v873, %v872
  %v888 = vpack.c.b16 %v875, %v874
  %v889 = vpack.c.b16 %v877, %v876
  %v890 = vpack.c.b16 %v879, %v878
  %v891 = vpack.c.b16 %v881, %v880
  %v892 = vpack.c.b16 %v883, %v882
  %v893 = vpack.c.b16 %v885, %v884
  %902 = vmatprep.subr.bf16.mxu0 0
  %903 = vmatpush1.bf16.msra.mxu0 %v893
  %904 = vmatprep.subr.bf16.mxu0 0
  %905 = vmatpush1.bf16.msra.mxu0 %v892
  %906 = vmatprep.subr.bf16.mxu0 0
  %907 = vmatpush1.bf16.msra.mxu0 %v891
  %908 = vmatprep.subr.bf16.mxu0 0
  %909 = vmatpush1.bf16.msra.mxu0 %v890
  %910 = vmatprep.subr.bf16.mxu0 0
  %911 = vmatpush1.bf16.msra.mxu0 %v889
  %912 = vmatprep.subr.bf16.mxu0 0
  %913 = vmatpush1.bf16.msra.mxu0 %v888
  %914 = vmatprep.subr.bf16.mxu0 0
  %915 = vmatpush1.bf16.msra.mxu0 %v887
  %916 = vmatprep.subr.bf16.mxu0 0
  %917 = vmatpush1.bf16.msra.mxu0 %v886
  %918 = vmatprep.subr.bf16.mxu0 0
  %919 = vmatpush2.bf16.msra.mxu0 0
  %920 = vmatprep.subr.bf16.mxu0 0
  %921 = vmatpush2.bf16.msra.mxu0 0
  %922 = vmatprep.subr.bf16.mxu0 0
  %923 = vmatpush2.bf16.msra.mxu0 0
  %924 = vmatprep.subr.bf16.mxu0 0
  %925 = vmatpush2.bf16.msra.mxu0 0
  %926 = vmatprep.subr.bf16.mxu0 0
  %927 = vmatpush2.bf16.msra.mxu0 0
  %928 = vmatprep.subr.bf16.mxu0 0
  %929 = vmatpush2.bf16.msra.mxu0 0
  %930 = vmatprep.subr.bf16.mxu0 0
  %931 = vmatpush2.bf16.msra.mxu0 0
  %932 = vmatprep.subr.bf16.mxu0 0
  %933 = vmatpush2.bf16.msra.mxu0 0
  %934 = vmatprep.mubr.bf16.mxu0 0
  %935 = vmatmul.mubr.bf16.gmra.mxu0 %v831
  %v936 = vpop.f32.mrf.mxu0
  %v937 = vadd.f32 %v853, %v936
  %v938 = vpop.f32.mrf.mxu0
  %v939 = vpop.f32.mrf.mxu0
  %v940 = vadd.f32 %v853, %v939
  %v941 = vpop.f32.mrf.mxu0
  %942 = vmatprep.mubr.bf16.mxu0 0
  %943 = vmatmul.mubr.bf16.gmra.mxu0 %v832
  %v944 = vpop.f32.mrf.mxu0
  %v945 = vadd.f32 %v853, %v944
  %v946 = vpop.f32.mrf.mxu0
  %v947 = vpop.f32.mrf.mxu0
  %v948 = vadd.f32 %v853, %v947
  %v949 = vpop.f32.mrf.mxu0
  %950 = vdwg.mxu0
  %v951 = vmax.f32 %v937, 0.0
  %v952 = vmax.f32 %v940, 0.0
  %v953 = vmax.f32 %v945, 0.0
  %v954 = vmax.f32 %v948, 0.0
  %vm955 = vcmask 261120
  %956 = vst.msk [vmem:[#allocation2] sm:$0xff] %vm955, %v951
  %958 = vrot.lane.b32.xlu0 %v952, 32
  %v959 = vpop.permute.xlu0 %958
  %vm961 = vcmask 523520
  %962 = vst.msk [vmem:[#allocation2] sm:$0xff] %vm961, %v959
  %964 = vrot.lane.b32.xlu0 %v953, 64
  %v965 = vpop.permute.xlu0 %964
  %vm967 = vcmask 785920
  %968 = vst.msk [vmem:[#allocation2] sm:$0xff] %vm967, %v965
  %970 = vrot.lane.b32.xlu0 %v954, 96
  %v971 = vpop.permute.xlu0 %970
  %vm973 = vcmask 1048320
  %974 = vst.msk [vmem:[#allocation2] sm:$0xff] %vm973, %v971
  %v975 = vld [vmem:[#allocation2] sm:$0xff]
  %v976 = vpack.c.bf16 %v975, %v975
  %v977 = vld [vmem:[%s2 + $0x240] sm:$0xf]
  %v978 = vld [vmem:[%s2 + $0x244] sm:$0xf]
  %v979 = vld [vmem:[%s2 + $0x248] sm:$0xf]
  %v980 = vld [vmem:[%s2 + $0x24c] sm:$0xf]
  %v981 = vld [vmem:[%s2 + $0x250] sm:$0xf]
  %v982 = vld [vmem:[%s2 + $0x254] sm:$0xf]
  %v983 = vld [vmem:[%s2 + $0x258] sm:$0xf]
  %v984 = vld [vmem:[%s2 + $0x25c] sm:$0xf]
  %v985 = vld [vmem:[%s2 + $0x260] sm:$0xf]
  %v986 = vld [vmem:[%s2 + $0x264] sm:$0xf]
  %v987 = vld [vmem:[%s2 + $0x268] sm:$0xf]
  %v988 = vld [vmem:[%s2 + $0x26c] sm:$0xf]
  %v989 = vld [vmem:[%s2 + $0x270] sm:$0xf]
  %v990 = vld [vmem:[%s2 + $0x274] sm:$0xf]
  %v991 = vld [vmem:[%s2 + $0x278] sm:$0xf]
  %v992 = vld [vmem:[%s2 + $0x27c] sm:$0xf]
  %v993 = vld [vmem:[%s3 + $0x2] sm:$0x1]
  %v994 = vlaneseq
  %v995 = vshrl.u32 %v994, 7
  %v996 = vsub.s32 0, %v995
  %v997 = vrot.slane %v993, %v996
  %v1014 = vunpack.c.l.b16 %v977
  %v1015 = vunpack.c.l.b16 %v978
  %v1016 = vunpack.c.l.b16 %v979
  %v1017 = vunpack.c.l.b16 %v980
  %v1018 = vunpack.c.l.b16 %v981
  %v1019 = vunpack.c.l.b16 %v982
  %v1020 = vunpack.c.l.b16 %v983
  %v1021 = vunpack.c.l.b16 %v984
  %v1022 = vunpack.c.l.b16 %v985
  %v1023 = vunpack.c.l.b16 %v986
  %v1024 = vunpack.c.l.b16 %v987
  %v1025 = vunpack.c.l.b16 %v988
  %v1026 = vunpack.c.l.b16 %v989
  %v1027 = vunpack.c.l.b16 %v990
  %v1028 = vunpack.c.l.b16 %v991
  %v1029 = vunpack.c.l.b16 %v992
  %v1030 = vpack.c.b16 %v1015, %v1014
  %v1031 = vpack.c.b16 %v1017, %v1016
  %v1032 = vpack.c.b16 %v1019, %v1018
  %v1033 = vpack.c.b16 %v1021, %v1020
  %v1034 = vpack.c.b16 %v1023, %v1022
  %v1035 = vpack.c.b16 %v1025, %v1024
  %v1036 = vpack.c.b16 %v1027, %v1026
  %v1037 = vpack.c.b16 %v1029, %v1028
  %1046 = vmatprep.subr.bf16.mxu0 0
  %1047 = vmatpush1.bf16.msra.mxu0 %v1037
  %1048 = vmatprep.subr.bf16.mxu0 0
  %1049 = vmatpush1.bf16.msra.mxu0 %v1036
  %1050 = vmatprep.subr.bf16.mxu0 0
  %1051 = vmatpush1.bf16.msra.mxu0 %v1035
  %1052 = vmatprep.subr.bf16.mxu0 0
  %1053 = vmatpush1.bf16.msra.mxu0 %v1034
  %1054 = vmatprep.subr.bf16.mxu0 0
  %1055 = vmatpush1.bf16.msra.mxu0 %v1033
  %1056 = vmatprep.subr.bf16.mxu0 0
  %1057 = vmatpush1.bf16.msra.mxu0 %v1032
  %1058 = vmatprep.subr.bf16.mxu0 0
  %1059 = vmatpush1.bf16.msra.mxu0 %v1031
  %1060 = vmatprep.subr.bf16.mxu0 0
  %1061 = vmatpush1.bf16.msra.mxu0 %v1030
  %1062 = vmatprep.subr.bf16.mxu0 0
  %1063 = vmatpush2.bf16.msra.mxu0 0
  %1064 = vmatprep.subr.bf16.mxu0 0
  %1065 = vmatpush2.bf16.msra.mxu0 0
  %1066 = vmatprep.subr.bf16.mxu0 0
  %1067 = vmatpush2.bf16.msra.mxu0 0
  %1068 = vmatprep.subr.bf16.mxu0 0
  %1069 = vmatpush2.bf16.msra.mxu0 0
  %1070 = vmatprep.subr.bf16.mxu0 0
  %1071 = vmatpush2.bf16.msra.mxu0 0
  %1072 = vmatprep.subr.bf16.mxu0 0
  %1073 = vmatpush2.bf16.msra.mxu0 0
  %1074 = vmatprep.subr.bf16.mxu0 0
  %1075 = vmatpush2.bf16.msra.mxu0 0
  %1076 = vmatprep.subr.bf16.mxu0 0
  %1077 = vmatpush2.bf16.msra.mxu0 0
  %1078 = vmatprep.mubr.bf16.mxu0 0
  %1079 = vmatmul.mubr.bf16.gmra.mxu0 %v976
  %v1080 = vpop.f32.mrf.mxu0
  %v1081 = vadd.f32 %v997, %v1080
  %v1082 = vpop.f32.mrf.mxu0
  %v1083 = vpop.f32.mrf.mxu0
  %v1084 = vpop.f32.mrf.mxu0
  %1085 = vdwg.mxu0
  %v1086 = vmax.f32 %v1081, 0.0
  %v1087 = vld [vmem:[%s1] sm:$0xff]
  %v1088 = vmul.f32 %v1086, %v1087
  %v1089 = vpack.c.bf16 %v1088, %v1088
  %v1090 = vld [vmem:[%s2 + $0x280] sm:$0xf]
  %v1091 = vld [vmem:[%s2 + $0x284] sm:$0xf]
  %v1092 = vld [vmem:[%s2 + $0x288] sm:$0xf]
  %v1093 = vld [vmem:[%s2 + $0x28c] sm:$0xf]
  %v1094 = vld [vmem:[%s2 + $0x290] sm:$0xf]
  %v1095 = vld [vmem:[%s2 + $0x294] sm:$0xf]
  %v1096 = vld [vmem:[%s2 + $0x298] sm:$0xf]
  %v1097 = vld [vmem:[%s2 + $0x29c] sm:$0xf]
  %v1098 = vld [vmem:[%s3 + $0x3] sm:$0x1]
  %v1099 = vlaneseq
  %v1100 = vshrl.u32 %v1099, 7
  %v1101 = vsub.s32 0, %v1100
  %v1102 = vrot.slane %v1098, %v1101
  %v1111 = vunpack.c.l.b16 %v1090
  %v1112 = vunpack.c.l.b16 %v1091
  %v1113 = vunpack.c.l.b16 %v1092
  %v1114 = vunpack.c.l.b16 %v1093
  %v1115 = vunpack.c.l.b16 %v1094
  %v1116 = vunpack.c.l.b16 %v1095
  %v1117 = vunpack.c.l.b16 %v1096
  %v1118 = vunpack.c.l.b16 %v1097
  %v1119 = vpack.c.b16 %v1112, %v1111
  %v1120 = vpack.c.b16 %v1114, %v1113
  %v1121 = vpack.c.b16 %v1116, %v1115
  %v1122 = vpack.c.b16 %v1118, %v1117
  %vm1127 = vcmask 523264
  %v1129 = vsel %vm1127, %v1089, 0
  %1131 = vmatprep.subr.bf16.mxu0 0
  %1132 = vmatpush1.bf16.msra.mxu0 0
  %1133 = vmatprep.subr.bf16.mxu0 0
  %1134 = vmatpush1.bf16.msra.mxu0 0
  %1135 = vmatprep.subr.bf16.mxu0 0
  %1136 = vmatpush1.bf16.msra.mxu0 0
  %1137 = vmatprep.subr.bf16.mxu0 0
  %1138 = vmatpush1.bf16.msra.mxu0 0
  %1139 = vmatprep.subr.bf16.mxu0 0
  %1140 = vmatpush1.bf16.msra.mxu0 %v1122
  %1141 = vmatprep.subr.bf16.mxu0 0
  %1142 = vmatpush1.bf16.msra.mxu0 %v1121
  %1143 = vmatprep.subr.bf16.mxu0 0
  %1144 = vmatpush1.bf16.msra.mxu0 %v1120
  %1145 = vmatprep.subr.bf16.mxu0 0
  %1146 = vmatpush1.bf16.msra.mxu0 %v1119
  %1147 = vmatprep.subr.bf16.mxu0 0
  %1148 = vmatpush2.bf16.msra.mxu0 0
  %1149 = vmatprep.subr.bf16.mxu0 0
  %1150 = vmatpush2.bf16.msra.mxu0 0
  %1151 = vmatprep.subr.bf16.mxu0 0
  %1152 = vmatpush2.bf16.msra.mxu0 0
  %1153 = vmatprep.subr.bf16.mxu0 0
  %1154 = vmatpush2.bf16.msra.mxu0 0
  %1155 = vmatprep.subr.bf16.mxu0 0
  %1156 = vmatpush2.bf16.msra.mxu0 0
  %1157 = vmatprep.subr.bf16.mxu0 0
  %1158 = vmatpush2.bf16.msra.mxu0 0
  %1159 = vmatprep.subr.bf16.mxu0 0
  %1160 = vmatpush2.bf16.msra.mxu0 0
  %1161 = vmatprep.subr.bf16.mxu0 0
  %1162 = vmatpush2.bf16.msra.mxu0 0
  %1163 = vmatprep.mubr.bf16.mxu0 0
  %1164 = vmatmul.mubr.bf16.gmra.mxu0 %v1129
  %v1165 = vpop.f32.mrf.mxu0
  %v1166 = vadd.f32 %v1102, %v1165
  %v1167 = vpop.f32.mrf.mxu0
  %v1168 = vpop.f32.mrf.mxu0
  %v1169 = vpop.f32.mrf.mxu0
  %1170 = vdwg.mxu0
  %v1171 = vmax.f32 %v1166, 0.0
  %v1172 = vpack.c.bf16 %v1171, %v1171
  %v1173 = vld [vmem:[%s2 + $0x2a0] sm:$0xf]
  %v1174 = vld [vmem:[%s2 + $0x2a4] sm:$0xf]
  %v1175 = vld [vmem:[%s2 + $0x2a8] sm:$0xf]
  %v1176 = vld [vmem:[%s2 + $0x2ac] sm:$0xf]
  %v1177 = vld [vmem:[%s2 + $0x2b0] sm:$0xf]
  %v1178 = vld [vmem:[%s2 + $0x2b4] sm:$0xf]
  %v1179 = vld [vmem:[%s2 + $0x2b8] sm:$0xf]
  %v1180 = vld [vmem:[%s2 + $0x2bc] sm:$0xf]
  %v1181 = vld [vmem:[%s3 + $0x4] sm:$0x1]
  %v1182 = vlaneseq
  %v1183 = vshrl.u32 %v1182, 7
  %v1184 = vsub.s32 0, %v1183
  %v1185 = vrot.slane %v1181, %v1184
  %v1194 = vunpack.c.l.b16 %v1173
  %v1195 = vunpack.c.l.b16 %v1174
  %v1196 = vunpack.c.l.b16 %v1175
  %v1197 = vunpack.c.l.b16 %v1176
  %v1198 = vunpack.c.l.b16 %v1177
  %v1199 = vunpack.c.l.b16 %v1178
  %v1200 = vunpack.c.l.b16 %v1179
  %v1201 = vunpack.c.l.b16 %v1180
  %v1202 = vpack.c.b16 %v1195, %v1194
  %v1203 = vpack.c.b16 %v1197, %v1196
  %v1204 = vpack.c.b16 %v1199, %v1198
  %v1205 = vpack.c.b16 %v1201, %v1200
  %v1211 = vsel %vm1127, %v1172, 0
  %1213 = vmatprep.subr.bf16.mxu0 0
  %1214 = vmatpush1.bf16.msra.mxu0 0
  %1215 = vmatprep.subr.bf16.mxu0 0
  %1216 = vmatpush1.bf16.msra.mxu0 0
  %1217 = vmatprep.subr.bf16.mxu0 0
  %1218 = vmatpush1.bf16.msra.mxu0 0
  %1219 = vmatprep.subr.bf16.mxu0 0
  %1220 = vmatpush1.bf16.msra.mxu0 0
  %1221 = vmatprep.subr.bf16.mxu0 0
  %1222 = vmatpush1.bf16.msra.mxu0 %v1205
  %1223 = vmatprep.subr.bf16.mxu0 0
  %1224 = vmatpush1.bf16.msra.mxu0 %v1204
  %1225 = vmatprep.subr.bf16.mxu0 0
  %1226 = vmatpush1.bf16.msra.mxu0 %v1203
  %1227 = vmatprep.subr.bf16.mxu0 0
  %1228 = vmatpush1.bf16.msra.mxu0 %v1202
  %1229 = vmatprep.subr.bf16.mxu0 0
  %1230 = vmatpush2.bf16.msra.mxu0 0
  %1231 = vmatprep.subr.bf16.mxu0 0
  %1232 = vmatpush2.bf16.msra.mxu0 0
  %1233 = vmatprep.subr.bf16.mxu0 0
  %1234 = vmatpush2.bf16.msra.mxu0 0
  %1235 = vmatprep.subr.bf16.mxu0 0
  %1236 = vmatpush2.bf16.msra.mxu0 0
  %1237 = vmatprep.subr.bf16.mxu0 0
  %1238 = vmatpush2.bf16.msra.mxu0 0
  %1239 = vmatprep.subr.bf16.mxu0 0
  %1240 = vmatpush2.bf16.msra.mxu0 0
  %1241 = vmatprep.subr.bf16.mxu0 0
  %1242 = vmatpush2.bf16.msra.mxu0 0
  %1243 = vmatprep.subr.bf16.mxu0 0
  %1244 = vmatpush2.bf16.msra.mxu0 0
  %1245 = vmatprep.mubr.bf16.mxu0 0
  %1246 = vmatmul.mubr.bf16.gmra.mxu0 %v1211
  %v1247 = vpop.f32.mrf.mxu0
  %v1248 = vadd.f32 %v1185, %v1247
  %v1249 = vpop.f32.mrf.mxu0
  %v1250 = vpop.f32.mrf.mxu0
  %v1251 = vpop.f32.mrf.mxu0
  %1252 = vdwg.mxu0
  %vm1253 = vcmask 64512
  %1254 = vst.msk [vmem:[%s4] sm:$0xff] %vm1253, %v1248
  // Predicated region
  $region18: #{_lambda_.1} parent=0 // pred_check
    _
  $region19: #{_lambda_.1} parent=0 // pred_check_branch
    %1256 = sbr.rel (0) target = $region21
  $region20: #{_lambda_.1} parent=0 // pred_region
    _
  $region21: #{_lambda_.1} parent=0 // pred_fallthru
    _
  // Predicated region
  $region22: #{_lambda_.1} parent=0 // pred_check
    _
  $region23: #{_lambda_.1} parent=0 // pred_check_branch
    %1258 = sbr.rel (0) target = $region25
  $region24: #{_lambda_.1} parent=0 // pred_region
    _
  $region25: #{_lambda_.1} parent=0 // pred_fallthru
    _

</llo_original>
